<compile_context>
chip_gen: v5e
topology: v5e:2x2
jax: 0.10.0
libtpu: 0.0.40
codegen_flags: <defaults>
</compile_context>

<pallas_src>
import jax
import jax.numpy as jnp
from jax.experimental import pallas as pl
from jax.experimental.pallas import tpu as pltpu

C, H, W = 1, 24, 24
POOL = 6
PH, PW = H // POOL, W // POOL        # 4, 4
FLAT_IN = C * H * W                  # 576
POOLED = C * PH * PW                 # 16
NUM_CLASSES = 2
OUT_PAD = 128                        # lane-dense padded class dim for the matmul
NEG_PAD = -1e30                      # bias value for padded class lanes


def _cdiv(a, b):
    return -(-a // b)


def _round_up(n, m):
    return _cdiv(n, m) * m


def _choose_tiling(bsz, max_rows):
    """Near-equal, 8-aligned row tiles; >= 2 tiles when bsz >= 16 (megacore)."""
    if bsz <= 8:
        return bsz, 1                      # single block == whole (tiny) batch
    ntiles = max(_cdiv(bsz, max_rows), 2 if bsz >= 16 else 1)
    tm = _round_up(_cdiv(bsz, ntiles), 8)
    return tm, _cdiv(bsz, tm)


def fuse_params(w1, b1):
    """Fold avg_pool2d(6) + Linear(16, 2) into one (576, 128) matmul + bias."""
    ih, iw = jnp.meshgrid(jnp.arange(H), jnp.arange(W), indexing="ij")
    pool_idx = ((ih // POOL) * PW + (iw // POOL)).reshape(-1)             # (576,)
    # w_fused[p, c] = w1[c, pool_idx(p)] / 36
    w_fused = jnp.take(w1.T.astype(jnp.float32), pool_idx, axis=0) / float(POOL * POOL)
    w_fused = jnp.pad(w_fused, ((0, 0), (0, OUT_PAD - NUM_CLASSES)))      # (576, 128)
    b_fused = jnp.pad(b1.astype(jnp.float32), (0, OUT_PAD - NUM_CLASSES),
                      constant_values=NEG_PAD).reshape(1, OUT_PAD)        # (1, 128)
    return w_fused, b_fused


def make_cnn_forward(w1, b1, *, mxu_dtype=jnp.bfloat16, max_block_rows=2048):
    """Build the fused forward once (weights fused/cast at build time, not per call).

    mxu_dtype=jnp.bfloat16 is the fast path on ALL generations (v5e/v6e/v7x
    MXUs are bf16-native); mxu_dtype=jnp.float32 requests exact-f32 matmul
    parity via precision=HIGHEST.
    """
    w_fused, b_fused = fuse_params(w1, b1)
    w_fused = w_fused.astype(mxu_dtype)          # resident MXU weight
    # b_fused stays f32: epilogue math is f32 (v5e has no bf16 VPU/EUP).
    strict_f32 = jnp.dtype(mxu_dtype) == jnp.dtype(jnp.float32)
    precision = jax.lax.Precision.HIGHEST if strict_f32 else None

    def cnn_kernel(x_ref, w_ref, b_ref, o_ref):
        # x_ref: (tm, 576) caller dtype; w_ref: (576, 128); b_ref: (1, 128) f32
        # o_ref: (tm, 2) f32 log-probs
        x = x_ref[...]
        if x.dtype != jnp.dtype(mxu_dtype):
            x = x.astype(mxu_dtype)              # in-kernel cast, hidden under DMA
        logits = jnp.dot(x, w_ref[...],
                         preferred_element_type=jnp.float32,
                         precision=precision) + b_ref[...]
        # log_softmax over classes; padded lanes carry -1e30 bias so they drop
        # out of the max / LSE reductions.
        m = jnp.max(logits, axis=-1, keepdims=True)
        shifted = logits - m
        lse = jnp.log(jnp.sum(jnp.exp(shifted), axis=-1, keepdims=True))
        o_ref[...] = shifted[:, :NUM_CLASSES] - lse      # narrow f32 writeback

    @jax.jit
    def forward(x_nchw):
        bsz = x_nchw.shape[0]
        x_flat = x_nchw.reshape(bsz, FLAT_IN)    # contiguous reshape: no copy/cast
        tm, ntiles = _choose_tiling(bsz, max_block_rows)
        return pl.pallas_call(
            cnn_kernel,
            out_shape=jax.ShapeDtypeStruct((bsz, NUM_CLASSES), jnp.float32),
            grid=(ntiles,),
            in_specs=[
                pl.BlockSpec((tm, FLAT_IN), lambda i: (i, 0)),       # streamed x tile
                pl.BlockSpec((FLAT_IN, OUT_PAD), lambda i: (0, 0)),  # resident W
                pl.BlockSpec((1, OUT_PAD), lambda i: (0, 0)),        # resident b
            ],
            out_specs=pl.BlockSpec((tm, NUM_CLASSES), lambda i: (i, 0)),
            compiler_params=pltpu.CompilerParams(
                dimension_semantics=("parallel",)),
        )(x_flat, w_fused, b_fused)

    return forward


def reference_forward(x_nchw, w1, b1):
    """Pure-JAX f32 reference of the PyTorch forward."""
    bsz = x_nchw.shape[0]
    pooled = x_nchw.reshape(bsz, C, PH, POOL, PW, POOL).mean(axis=(3, 5))
    pooled = pooled.reshape(bsz, POOLED)
    logits = pooled @ w1.T + b1
    return jax.nn.log_softmax(logits, axis=1)


if __name__ == "__main__":
    key = jax.random.PRNGKey(0)
    kx, kw, kb, kx2 = jax.random.split(key, 4)

    # Deterministic synthetic inputs (batch=2, NCHW = (2, 1, 24, 24)).
    B = 2
    x = jax.random.normal(kx, (B, C, H, W), dtype=jnp.float32)

    # nn.Linear(16, 2) init: uniform(-1/sqrt(16), 1/sqrt(16)).
    bound = 1.0 / jnp.sqrt(jnp.float32(POOLED))
    w1 = jax.random.uniform(kw, (NUM_CLASSES, POOLED), jnp.float32, -bound, bound)
    b1 = jax.random.uniform(kb, (NUM_CLASSES,), jnp.float32, -bound, bound)

    fwd = make_cnn_forward(w1, b1)           # bf16 MXU inputs, f32 accumulate/epilogue

    out = jax.block_until_ready(fwd(x))
    ref = reference_forward(x, w1, b1)
    assert out.shape == (B, NUM_CLASSES)
    # bf16 MXU inputs -> ~1e-3 absolute error on these O(0.1) logits.
    assert jnp.allclose(out, ref, atol=2e-2, rtol=2e-2), (out, ref)

    # Larger batch: exercises the multi-tile "parallel" grid (two 40-row tiles,
    # second tile partial / clipped by Pallas) with the same compiled forward.
    B2 = 72
    x2 = jax.random.normal(kx2, (B2, C, H, W), dtype=jnp.float32)
    out2 = jax.block_until_ready(fwd(x2))
    ref2 = reference_forward(x2, w1, b1)
    assert out2.shape == (B2, NUM_CLASSES)
    assert jnp.allclose(out2, ref2, atol=2e-2, rtol=2e-2)

    print("KERNEL_OK")
</pallas_src>

<mosaic_0001>
module attributes {stable_mosaic.version = 11 : i64} {
  func.func @cnn_kernel(%arg0: i32, %arg1: memref<2x576xf32, #tpu.memory_space<vmem>>, %arg2: memref<576x128xbf16, #tpu.memory_space<vmem>>, %arg3: memref<1x128xf32, #tpu.memory_space<vmem>>, %arg4: memref<2x2xf32, #tpu.memory_space<vmem>>) attributes {dimension_semantics = [#tpu.dimension_semantics<parallel>], iteration_bounds = array<i64: 1>, scalar_prefetch = 0 : i64, scratch_operands = 0 : i64, tpu.core_type = #tpu.core_type<tc>, window_params = [{transform_indices = @transform_0, window_bounds = array<i64: 2, 576>}, {pipeline_mode = #tpu.pipeline_mode<synchronous>, transform_indices = @transform_1, window_bounds = array<i64: 576, 128>}, {pipeline_mode = #tpu.pipeline_mode<synchronous>, transform_indices = @transform_2, window_bounds = array<i64: 1, 128>}, {transform_indices = @transform_3, window_bounds = array<i64: 2, 2>}]} {
    %c0 = arith.constant 0 : index
    %c0_0 = arith.constant 0 : index
    %0 = vector.load %arg1[%c0, %c0_0] : memref<2x576xf32, #tpu.memory_space<vmem>>, vector<2x576xf32>
    %1 = arith.truncf %0 : vector<2x576xf32> to vector<2x576xbf16>
    %c0_1 = arith.constant 0 : index
    %c0_2 = arith.constant 0 : index
    %2 = vector.load %arg2[%c0_1, %c0_2] : memref<576x128xbf16, #tpu.memory_space<vmem>>, vector<576x128xbf16>
    %cst = arith.constant dense<0.000000e+00> : vector<2x128xf32>
    %3 = tpu.matmul %1, %2, %cst {dimension_numbers = #tpu.dot_dimension_numbers<[1], [0], [0], [1], [0, 0, 1, 1], [], []>} : vector<2x576xbf16>, vector<576x128xbf16>, vector<2x128xf32> -> vector<2x128xf32>
    %c0_3 = arith.constant 0 : index
    %c0_4 = arith.constant 0 : index
    %4 = vector.load %arg3[%c0_3, %c0_4] : memref<1x128xf32, #tpu.memory_space<vmem>>, vector<1x128xf32>
    %5 = vector.broadcast %4 : vector<1x128xf32> to vector<2x128xf32>
    %6 = arith.addf %3, %5 : vector<2x128xf32>
    %cst_5 = arith.constant dense<0xFF800000> : vector<2xf32>
    %7 = vector.multi_reduction <maximumf>, %6, %cst_5 [1] : vector<2x128xf32> to vector<2xf32>
    %8 = vector.shape_cast %7 : vector<2xf32> to vector<2x1xf32>
    %9 = vector.broadcast %8 : vector<2x1xf32> to vector<2x128xf32>
    %10 = arith.subf %6, %9 : vector<2x128xf32>
    %11 = math.exp %10 : vector<2x128xf32>
    %cst_6 = arith.constant dense<0.000000e+00> : vector<2xf32>
    %12 = vector.multi_reduction <add>, %11, %cst_6 [1] : vector<2x128xf32> to vector<2xf32>
    %13 = vector.shape_cast %12 : vector<2xf32> to vector<2x1xf32>
    %14 = math.log %13 : vector<2x1xf32>
    %15 = vector.extract_strided_slice %10 {offsets = [0, 0], sizes = [2, 2], strides = [1, 1]} : vector<2x128xf32> to vector<2x2xf32>
    %16 = vector.broadcast %14 : vector<2x1xf32> to vector<2x2xf32>
    %17 = arith.subf %15, %16 : vector<2x2xf32>
    %c0_7 = arith.constant 0 : index
    %c0_8 = arith.constant 0 : index
    %18 = vector.load %arg4[%c0_7, %c0_8] : memref<2x2xf32, #tpu.memory_space<vmem>>, vector<2x2xf32>
    tpu.vector_store %arg4[%c0_7, %c0_8], %17 {strides = array<i32>} : memref<2x2xf32, #tpu.memory_space<vmem>>, vector<2x2xf32>,
    return
  }
  func.func @transform_0(%arg0: i32) -> (i32, i32) {
    %c0_i32 = arith.constant 0 : i32
    %c0_i32_0 = arith.constant 0 : i32
    return %arg0, %c0_i32 : i32, i32
  }
  func.func @transform_1(%arg0: i32) -> (i32, i32) {
    %c0_i32 = arith.constant 0 : i32
    %c0_i32_0 = arith.constant 0 : i32
    %c0_i32_1 = arith.constant 0 : i32
    return %c0_i32, %c0_i32_0 : i32, i32
  }
  func.func @transform_2(%arg0: i32) -> (i32, i32) {
    %c0_i32 = arith.constant 0 : i32
    %c0_i32_0 = arith.constant 0 : i32
    %c0_i32_1 = arith.constant 0 : i32
    return %c0_i32, %c0_i32_0 : i32, i32
  }
  func.func @transform_3(%arg0: i32) -> (i32, i32) {
    %c0_i32 = arith.constant 0 : i32
    %c0_i32_0 = arith.constant 0 : i32
    return %arg0, %c0_i32 : i32, i32
  }
}

</mosaic_0001>

<llo_original>
// kernel: forward.1
$region0: #{forward.1}
  #allocation0 [shape = 'u32[]', space=smem, size = 0x4, offset = 0x4, fixed_abs, tag = 'smem constant byte address 0x4 - core index']
  #allocation1 [shape = 'u32[72,128]{1,0:T(1,128)}', space=vmem, size = 0x9000, scoped, tag = 'internal scratch']
  %s0 = inlined_call_operand.vmem [shape: f32[2,576], index: 0, kind: input, shape index: {}]
  %s1 = inlined_call_operand.hbm [shape: bf16[576,128], index: 1, kind: input, shape index: {}]
  %s2 = inlined_call_operand.vmem [shape: f32[1,128], index: 2, kind: input, shape index: {}]
  %s3 = inlined_call_operand.hbm [shape: f32[2,2], index: 3, kind: output, shape index: {}]
  %s4 = sld [smem:[#allocation0]]
  $region26: #{forward.1} parent=0
    _
  %s6 = ssub.s32 1, %s4
  %s7 = scalar_select 0, %s6, %s4
  $region1: #{forward.1} parent=0
    #allocation2 [shape = 'u8[147456]{0}', space=vmem, size = 0x24000, scoped, tag = 'input window, operand 1, single buffered']
    #allocation3 [shape = 's32[1]{0}', space=sflag, size = 0x4, scoped, tag = 'scoped memory for forward.1']
    #allocation4 [shape = 's32[1]{0}', space=sflag, size = 0x4, scoped, tag = 'scoped memory for forward.1']
    #allocation5 [shape = 'u8[1024]{0}', space=vmem, size = 0x400, scoped, tag = 'output window, operand 0, single buffered']
    %8 = vsyncpa [#allocation3], 0
    %9 = vsyncpa [#allocation4], 0
    // Predicated region
    $region2: #{forward.1} parent=1 // pred_check
      _
    $region3: #{forward.1} parent=1 // pred_check_branch
      %11 = sbr.rel (0) target = $region5
    $region4: #{forward.1} parent=1 // pred_region
      _
    $region5: #{forward.1} parent=1 // pred_fallthru
      _
    // Predicated region
    $region6: #{forward.1} parent=1 // pred_check
      _
    $region7: #{forward.1} parent=1 // pred_check_branch
      %13 = sbr.rel (0) target = $region9
    $region8: #{forward.1} parent=1 // pred_region
      %15 = vsyncadd [#allocation3], 0
      %s16 = sshll.u32 %s1, 4
      %s17 = int_to_ptr.hbm [resolvable:$true] %s16
      %s18 = sshll.u32 [#allocation2], 4
      %s19 = int_to_ptr.vmem [resolvable:$true] %s18
      %24 = dma.hbm_to_vmem [thread:$0]  %s17, 4608, %s19, [#allocation3], 64, 64, 4
    $region9: #{forward.1} parent=1 // pred_fallthru
      _
    // Predicated region
    $region10: #{forward.1} parent=1 // pred_check
      _
    $region11: #{forward.1} parent=1 // pred_check_branch
      %26 = sbr.rel (0) target = $region13
    $region12: #{forward.1} parent=1 // pred_region
      _
    $region13: #{forward.1} parent=1 // pred_fallthru
      _
    // Predicated region
    $region14: #{forward.1} parent=1 // pred_check
      _
    $region15: #{forward.1} parent=1 // pred_check_branch
      %28 = sbr.rel (0) target = $region17
    $region16: #{forward.1} parent=1 // pred_region
      %30 = dma.done [#allocation3], 4608
    $region17: #{forward.1} parent=1 // pred_fallthru
      _
    %v32 = vld [vmem:[%s0] sm:$0xff]
    %v33 = vld [vmem:[%s0 + $0x8] sm:$0x3]
    %36 = vst [vmem:[#allocation1] ss:$4 sm:$0xff] %v32
    %s37 = scalar_lea.vmem [#allocation1], 32
    %38 = vst [vmem:[%s37] ss:$4 sm:$0xff] %v33
    %v39 = vld.sshfl [vmem:[#allocation1] sm:$0xff pattern:$0x73625140]
    %v40 = vld.sshfl [vmem:[#allocation1 + $0x8] sm:$0xff pattern:$0x73625140]
    %v41 = vld.sshfl [vmem:[#allocation1 + $0x10] sm:$0xff pattern:$0x73625140]
    %v42 = vld.sshfl [vmem:[#allocation1 + $0x18] sm:$0xff pattern:$0x73625140]
    %v43 = vld.sshfl [vmem:[#allocation1 + $0x20] sm:$0xff pattern:$0x73625140]
    %v49 = vpack.c.bf16 %v39, %v39
    %v50 = vpack.c.bf16 %v40, %v40
    %v51 = vpack.c.bf16 %v41, %v41
    %v52 = vpack.c.bf16 %v42, %v42
    %v53 = vpack.c.bf16 %v43, %v43
    %v54 = vld [vmem:[#allocation2] sm:$0xf]
    %v55 = vld [vmem:[#allocation2 + $0x4] sm:$0xf]
    %v56 = vld [vmem:[#allocation2 + $0x8] sm:$0xf]
    %v57 = vld [vmem:[#allocation2 + $0xc] sm:$0xf]
    %v58 = vld [vmem:[#allocation2 + $0x10] sm:$0xf]
    %v59 = vld [vmem:[#allocation2 + $0x14] sm:$0xf]
    %v60 = vld [vmem:[#allocation2 + $0x18] sm:$0xf]
    %v61 = vld [vmem:[#allocation2 + $0x1c] sm:$0xf]
    %v62 = vld [vmem:[#allocation2 + $0x20] sm:$0xf]
    %v63 = vld [vmem:[#allocation2 + $0x24] sm:$0xf]
    %v64 = vld [vmem:[#allocation2 + $0x28] sm:$0xf]
    %v65 = vld [vmem:[#allocation2 + $0x2c] sm:$0xf]
    %v66 = vld [vmem:[#allocation2 + $0x30] sm:$0xf]
    %v67 = vld [vmem:[#allocation2 + $0x34] sm:$0xf]
    %v68 = vld [vmem:[#allocation2 + $0x38] sm:$0xf]
    %v69 = vld [vmem:[#allocation2 + $0x3c] sm:$0xf]
    %v70 = vld [vmem:[#allocation2 + $0x40] sm:$0xf]
    %v71 = vld [vmem:[#allocation2 + $0x44] sm:$0xf]
    %v72 = vld [vmem:[#allocation2 + $0x48] sm:$0xf]
    %v73 = vld [vmem:[#allocation2 + $0x4c] sm:$0xf]
    %v74 = vld [vmem:[#allocation2 + $0x50] sm:$0xf]
    %v75 = vld [vmem:[#allocation2 + $0x54] sm:$0xf]
    %v76 = vld [vmem:[#allocation2 + $0x58] sm:$0xf]
    %v77 = vld [vmem:[#allocation2 + $0x5c] sm:$0xf]
    %v78 = vld [vmem:[#allocation2 + $0x60] sm:$0xf]
    %v79 = vld [vmem:[#allocation2 + $0x64] sm:$0xf]
    %v80 = vld [vmem:[#allocation2 + $0x68] sm:$0xf]
    %v81 = vld [vmem:[#allocation2 + $0x6c] sm:$0xf]
    %v82 = vld [vmem:[#allocation2 + $0x70] sm:$0xf]
    %v83 = vld [vmem:[#allocation2 + $0x74] sm:$0xf]
    %v84 = vld [vmem:[#allocation2 + $0x78] sm:$0xf]
    %v85 = vld [vmem:[#allocation2 + $0x7c] sm:$0xf]
    %v86 = vld [vmem:[#allocation2 + $0x80] sm:$0xf]
    %v87 = vld [vmem:[#allocation2 + $0x84] sm:$0xf]
    %v88 = vld [vmem:[#allocation2 + $0x88] sm:$0xf]
    %v89 = vld [vmem:[#allocation2 + $0x8c] sm:$0xf]
    %v90 = vld [vmem:[#allocation2 + $0x90] sm:$0xf]
    %v91 = vld [vmem:[#allocation2 + $0x94] sm:$0xf]
    %v92 = vld [vmem:[#allocation2 + $0x98] sm:$0xf]
    %v93 = vld [vmem:[#allocation2 + $0x9c] sm:$0xf]
    %v94 = vld [vmem:[#allocation2 + $0xa0] sm:$0xf]
    %v95 = vld [vmem:[#allocation2 + $0xa4] sm:$0xf]
    %v96 = vld [vmem:[#allocation2 + $0xa8] sm:$0xf]
    %v97 = vld [vmem:[#allocation2 + $0xac] sm:$0xf]
    %v98 = vld [vmem:[#allocation2 + $0xb0] sm:$0xf]
    %v99 = vld [vmem:[#allocation2 + $0xb4] sm:$0xf]
    %v100 = vld [vmem:[#allocation2 + $0xb8] sm:$0xf]
    %v101 = vld [vmem:[#allocation2 + $0xbc] sm:$0xf]
    %v102 = vld [vmem:[#allocation2 + $0xc0] sm:$0xf]
    %v103 = vld [vmem:[#allocation2 + $0xc4] sm:$0xf]
    %v104 = vld [vmem:[#allocation2 + $0xc8] sm:$0xf]
    %v105 = vld [vmem:[#allocation2 + $0xcc] sm:$0xf]
    %v106 = vld [vmem:[#allocation2 + $0xd0] sm:$0xf]
    %v107 = vld [vmem:[#allocation2 + $0xd4] sm:$0xf]
    %v108 = vld [vmem:[#allocation2 + $0xd8] sm:$0xf]
    %v109 = vld [vmem:[#allocation2 + $0xdc] sm:$0xf]
    %v110 = vld [vmem:[#allocation2 + $0xe0] sm:$0xf]
    %v111 = vld [vmem:[#allocation2 + $0xe4] sm:$0xf]
    %v112 = vld [vmem:[#allocation2 + $0xe8] sm:$0xf]
    %v113 = vld [vmem:[#allocation2 + $0xec] sm:$0xf]
    %v114 = vld [vmem:[#allocation2 + $0xf0] sm:$0xf]
    %v115 = vld [vmem:[#allocation2 + $0xf4] sm:$0xf]
    %v116 = vld [vmem:[#allocation2 + $0xf8] sm:$0xf]
    %v117 = vld [vmem:[#allocation2 + $0xfc] sm:$0xf]
    %v118 = vld [vmem:[#allocation2 + $0x100] sm:$0xf]
    %v119 = vld [vmem:[#allocation2 + $0x104] sm:$0xf]
    %v120 = vld [vmem:[#allocation2 + $0x108] sm:$0xf]
    %v121 = vld [vmem:[#allocation2 + $0x10c] sm:$0xf]
    %v122 = vld [vmem:[#allocation2 + $0x110] sm:$0xf]
    %v123 = vld [vmem:[#allocation2 + $0x114] sm:$0xf]
    %v124 = vld [vmem:[#allocation2 + $0x118] sm:$0xf]
    %v125 = vld [vmem:[#allocation2 + $0x11c] sm:$0xf]
    %v126 = vld [vmem:[%s2] sm:$0x1]
    %v128 = vperm.slane %v126, 0
    %v202 = vunpack.c.l.b16 %v54
    %v203 = vunpack.c.l.b16 %v55
    %v204 = vunpack.c.l.b16 %v56
    %v205 = vunpack.c.l.b16 %v57
    %v206 = vunpack.c.l.b16 %v58
    %v207 = vunpack.c.l.b16 %v59
    %v208 = vunpack.c.l.b16 %v60
    %v209 = vunpack.c.l.b16 %v61
    %v210 = vunpack.c.l.b16 %v62
    %v211 = vunpack.c.l.b16 %v63
    %v212 = vunpack.c.l.b16 %v64
    %v213 = vunpack.c.l.b16 %v65
    %v214 = vunpack.c.l.b16 %v66
    %v215 = vunpack.c.l.b16 %v67
    %v216 = vunpack.c.l.b16 %v68
    %v217 = vunpack.c.l.b16 %v69
    %v218 = vunpack.c.l.b16 %v70
    %v219 = vunpack.c.l.b16 %v71
    %v220 = vunpack.c.l.b16 %v72
    %v221 = vunpack.c.l.b16 %v73
    %v222 = vunpack.c.l.b16 %v74
    %v223 = vunpack.c.l.b16 %v75
    %v224 = vunpack.c.l.b16 %v76
    %v225 = vunpack.c.l.b16 %v77
    %v226 = vunpack.c.l.b16 %v78
    %v227 = vunpack.c.l.b16 %v79
    %v228 = vunpack.c.l.b16 %v80
    %v229 = vunpack.c.l.b16 %v81
    %v230 = vunpack.c.l.b16 %v82
    %v231 = vunpack.c.l.b16 %v83
    %v232 = vunpack.c.l.b16 %v84
    %v233 = vunpack.c.l.b16 %v85
    %v234 = vunpack.c.l.b16 %v86
    %v235 = vunpack.c.l.b16 %v87
    %v236 = vunpack.c.l.b16 %v88
    %v237 = vunpack.c.l.b16 %v89
    %v238 = vunpack.c.l.b16 %v90
    %v239 = vunpack.c.l.b16 %v91
    %v240 = vunpack.c.l.b16 %v92
    %v241 = vunpack.c.l.b16 %v93
    %v242 = vunpack.c.l.b16 %v94
    %v243 = vunpack.c.l.b16 %v95
    %v244 = vunpack.c.l.b16 %v96
    %v245 = vunpack.c.l.b16 %v97
    %v246 = vunpack.c.l.b16 %v98
    %v247 = vunpack.c.l.b16 %v99
    %v248 = vunpack.c.l.b16 %v100
    %v249 = vunpack.c.l.b16 %v101
    %v250 = vunpack.c.l.b16 %v102
    %v251 = vunpack.c.l.b16 %v103
    %v252 = vunpack.c.l.b16 %v104
    %v253 = vunpack.c.l.b16 %v105
    %v254 = vunpack.c.l.b16 %v106
    %v255 = vunpack.c.l.b16 %v107
    %v256 = vunpack.c.l.b16 %v108
    %v257 = vunpack.c.l.b16 %v109
    %v258 = vunpack.c.l.b16 %v110
    %v259 = vunpack.c.l.b16 %v111
    %v260 = vunpack.c.l.b16 %v112
    %v261 = vunpack.c.l.b16 %v113
    %v262 = vunpack.c.l.b16 %v114
    %v263 = vunpack.c.l.b16 %v115
    %v264 = vunpack.c.l.b16 %v116
    %v265 = vunpack.c.l.b16 %v117
    %v266 = vunpack.c.l.b16 %v118
    %v267 = vunpack.c.l.b16 %v119
    %v268 = vunpack.c.l.b16 %v120
    %v269 = vunpack.c.l.b16 %v121
    %v270 = vunpack.c.l.b16 %v122
    %v271 = vunpack.c.l.b16 %v123
    %v272 = vunpack.c.l.b16 %v124
    %v273 = vunpack.c.l.b16 %v125
    %v274 = vpack.c.b16 %v203, %v202
    %v275 = vpack.c.b16 %v205, %v204
    %v276 = vpack.c.b16 %v207, %v206
    %v277 = vpack.c.b16 %v209, %v208
    %v278 = vpack.c.b16 %v211, %v210
    %v279 = vpack.c.b16 %v213, %v212
    %v280 = vpack.c.b16 %v215, %v214
    %v281 = vpack.c.b16 %v217, %v216
    %v282 = vpack.c.b16 %v219, %v218
    %v283 = vpack.c.b16 %v221, %v220
    %v284 = vpack.c.b16 %v223, %v222
    %v285 = vpack.c.b16 %v225, %v224
    %v286 = vpack.c.b16 %v227, %v226
    %v287 = vpack.c.b16 %v229, %v228
    %v288 = vpack.c.b16 %v231, %v230
    %v289 = vpack.c.b16 %v233, %v232
    %v290 = vpack.c.b16 %v235, %v234
    %v291 = vpack.c.b16 %v237, %v236
    %v292 = vpack.c.b16 %v239, %v238
    %v293 = vpack.c.b16 %v241, %v240
    %v294 = vpack.c.b16 %v243, %v242
    %v295 = vpack.c.b16 %v245, %v244
    %v296 = vpack.c.b16 %v247, %v246
    %v297 = vpack.c.b16 %v249, %v248
    %v298 = vpack.c.b16 %v251, %v250
    %v299 = vpack.c.b16 %v253, %v252
    %v300 = vpack.c.b16 %v255, %v254
    %v301 = vpack.c.b16 %v257, %v256
    %v302 = vpack.c.b16 %v259, %v258
    %v303 = vpack.c.b16 %v261, %v260
    %v304 = vpack.c.b16 %v263, %v262
    %v305 = vpack.c.b16 %v265, %v264
    %v306 = vpack.c.b16 %v267, %v266
    %v307 = vpack.c.b16 %v269, %v268
    %v308 = vpack.c.b16 %v271, %v270
    %v309 = vpack.c.b16 %v273, %v272
    %vm346 = vcmask 523264
    %v348 = vsel %vm346, %v53, 0
    %350 = vmatpush.bf16.msra.mxu0 %v281
    %351 = vmatpush.bf16.msra.mxu0 %v280
    %352 = vmatpush.bf16.msra.mxu0 %v279
    %353 = vmatpush.bf16.msra.mxu0 %v278
    %354 = vmatpush.bf16.msra.mxu0 %v277
    %355 = vmatpush.bf16.msra.mxu0 %v276
    %356 = vmatpush.bf16.msra.mxu0 %v275
    %357 = vmatpush.bf16.msra.mxu0 %v274
    %358 = vmatmul.bf16.gmra.mxu0 %v49
    %v359 = vpop.f32.mrf.mxu0
    %v360 = vadd.f32 %v128, %v359
    %v361 = vpop.f32.mrf.mxu0
    %362 = vdwg.mxu0
    %363 = vmatpush.bf16.msra.mxu0 %v289
    %364 = vmatpush.bf16.msra.mxu0 %v288
    %365 = vmatpush.bf16.msra.mxu0 %v287
    %366 = vmatpush.bf16.msra.mxu0 %v286
    %367 = vmatpush.bf16.msra.mxu0 %v285
    %368 = vmatpush.bf16.msra.mxu0 %v284
    %369 = vmatpush.bf16.msra.mxu0 %v283
    %370 = vmatpush.bf16.msra.mxu0 %v282
    %371 = vmatmul.bf16.gmra.mxu0 %v50
    %v372 = vpop.f32.mrf.mxu0
    %v373 = vadd.f32 %v360, %v372
    %v374 = vpop.f32.mrf.mxu0
    %375 = vdwg.mxu0
    %376 = vmatpush.bf16.msra.mxu0 %v297
    %377 = vmatpush.bf16.msra.mxu0 %v296
    %378 = vmatpush.bf16.msra.mxu0 %v295
    %379 = vmatpush.bf16.msra.mxu0 %v294
    %380 = vmatpush.bf16.msra.mxu0 %v293
    %381 = vmatpush.bf16.msra.mxu0 %v292
    %382 = vmatpush.bf16.msra.mxu0 %v291
    %383 = vmatpush.bf16.msra.mxu0 %v290
    %384 = vmatmul.bf16.gmra.mxu0 %v51
    %v385 = vpop.f32.mrf.mxu0
    %v386 = vadd.f32 %v373, %v385
    %v387 = vpop.f32.mrf.mxu0
    %388 = vdwg.mxu0
    %389 = vmatpush.bf16.msra.mxu0 %v305
    %390 = vmatpush.bf16.msra.mxu0 %v304
    %391 = vmatpush.bf16.msra.mxu0 %v303
    %392 = vmatpush.bf16.msra.mxu0 %v302
    %393 = vmatpush.bf16.msra.mxu0 %v301
    %394 = vmatpush.bf16.msra.mxu0 %v300
    %395 = vmatpush.bf16.msra.mxu0 %v299
    %396 = vmatpush.bf16.msra.mxu0 %v298
    %397 = vmatmul.bf16.gmra.mxu0 %v52
    %v398 = vpop.f32.mrf.mxu0
    %v399 = vadd.f32 %v386, %v398
    %v400 = vpop.f32.mrf.mxu0
    %401 = vdwg.mxu0
    %402 = vmatpush.bf16.msra.mxu0 0
    %403 = vmatpush.bf16.msra.mxu0 0
    %404 = vmatpush.bf16.msra.mxu0 0
    %405 = vmatpush.bf16.msra.mxu0 0
    %406 = vmatpush.bf16.msra.mxu0 %v309
    %407 = vmatpush.bf16.msra.mxu0 %v308
    %408 = vmatpush.bf16.msra.mxu0 %v307
    %409 = vmatpush.bf16.msra.mxu0 %v306
    %410 = vmatmul.bf16.gmra.mxu0 %v348
    %v411 = vpop.f32.mrf.mxu0
    %v412 = vadd.f32 %v399, %v411
    %v413 = vpop.f32.mrf.mxu0
    %414 = vdwg.mxu0
    %vm415 = vcmask 1041408
    %v416 = vsel %vm415, %v412, -inf
    %417 = vmax.xlane.f32.xlu0 %v416
    %v418 = vpop.xlane.xlu0 %417
    %v419 = vsub.f32 %v412, %v418
    %v420 = vmul.f32 %v419, 1.442695
    %v421 = vpow.pop %v420
    %v422 = vsel %vm415, %v421, 0.0
    %423 = vadd.xlane.f32.xlu0 %v422
    %v424 = vpop.xlane.xlu0 %423
    %v425 = vlog2.pop %v424
    %v426 = vmul.f32 %v425, 0.6931472
    %v427 = vsub.f32 %v419, %v426
    %vm428 = vcmask 9216
    %429 = vst.msk [vmem:[#allocation5] sm:$0x3] %vm428, %v427
    // Predicated region
    $region18: #{forward.1} parent=1 // pred_check
      _
    $region19: #{forward.1} parent=1 // pred_check_branch
      %431 = sbr.rel (0) target = $region21
    $region20: #{forward.1} parent=1 // pred_region
      %433 = vsyncadd [#allocation4], 0
      %s435 = sshll.u32 [#allocation5], 4
      %s436 = int_to_ptr.vmem [resolvable:$true] %s435
      %s437 = sshll.u32 %s3, 4
      %s438 = int_to_ptr.hbm [resolvable:$true] %s437
      %440 = dma.vmem_to_hbm [thread:$0]  %s436, 32, %s438, [#allocation4]
    $region21: #{forward.1} parent=1 // pred_fallthru
      _
    // Predicated region
    $region22: #{forward.1} parent=1 // pred_check
      _
    $region23: #{forward.1} parent=1 // pred_check_branch
      %442 = sbr.rel (0) target = $region25
    $region24: #{forward.1} parent=1 // pred_region
      %444 = dma.done [#allocation4], 32
    $region25: #{forward.1} parent=1 // pred_fallthru
      _
    %445 = vsyncpa [#allocation3], 1
    %446 = vsyncpa [#allocation4], 1

</llo_original>
